<compile_context>
chip_gen: v7x
topology: tpu7x:2x2x1
jax: 0.10.0
libtpu: 0.0.40
codegen_flags: <defaults>
</compile_context>

<pallas_src>
from functools import partial

import jax
import jax.numpy as jnp
from jax import lax
from jax.experimental import pallas as pl
from jax.experimental.pallas import tpu as pltpu


def _round_up(x: int, m: int) -> int:
    return ((x + m - 1) // m) * m


def _pick_tile(dim: int, align: int, t_max: int) -> int:
    """Largest tile <= t_max that is a multiple of `align` and divides `dim`.

    `dim` must already be a multiple of `align`, so `align` always qualifies.
    Picking a divisor avoids padding beyond the mandatory (8,128) alignment.
    """
    best = align
    for t in range(align, min(t_max, dim) + 1, align):
        if dim % t == 0:
            best = t
    return best


def _stable_softplus(x):
    # Numerically stable softplus using only exp/log (EUP ops, guaranteed to
    # lower in Mosaic): softplus(x) = max(x, 0) + log(1 + exp(-|x|)).
    return jnp.maximum(x, 0.0) + jnp.log(1.0 + jnp.exp(-jnp.abs(x)))


def _vilinear_kernel(x_ref, mu_w_ref, rho_w_ref, eps_w_ref, b_ref, o_ref,
                     acc_ref, *, matmul_dtype):
    k = pl.program_id(2)

    @pl.when(k == 0)
    def _():
        acc_ref[...] = jnp.zeros_like(acc_ref)

    # Reparameterized weight sample fused with the matmul.  softplus runs on
    # the EUP (idle slot here) so it is hidden under the weight-stream DMA.
    rho = rho_w_ref[...]
    w = mu_w_ref[...] + _stable_softplus(rho) * eps_w_ref[...]   # [tn, tk]
    x = x_ref[...]                                               # [tm, tk]
    if matmul_dtype is not None:
        x = x.astype(matmul_dtype)
        w = w.astype(matmul_dtype)

    # Contract the last dim of both operands (x @ W.T) -> no weight transpose.
    acc_ref[...] += lax.dot_general(
        x, w,
        dimension_numbers=(((1,), (1,)), ((), ())),
        preferred_element_type=jnp.float32)

    @pl.when(k == pl.num_programs(2) - 1)
    def _():
        o_ref[...] = (acc_ref[...] + b_ref[...]).astype(o_ref.dtype)


def vilinear_forward(x, mu_w, rho_w, eps_w, mu_b, rho_b, eps_b,
                     *, tm_max=512, tn_max=512, tk_max=1024, matmul_dtype=None):
    """Single-MC-sample VILinear forward.

    y = x @ (mu_w + softplus(rho_w) * eps_w).T + (mu_b + softplus(rho_b) * eps_b)

    x:                [B, K]   (K = in_features)
    mu_w/rho_w/eps_w: [N, K]   (N = out_features, PyTorch nn.Linear layout)
    mu_b/rho_b/eps_b: [1, N]
    returns           [B, N]
    """
    B, K = x.shape
    N = mu_w.shape[0]

    # Bias is tiny -> sample it once in the wrapper, pass a single [1, N] stream.
    bias = mu_b + jax.nn.softplus(rho_b) * eps_b

    # Align dims to the (8, 128) vreg tile; pick tile sizes as divisors of the
    # aligned dims so no padding beyond alignment is ever needed.
    Mp, Np, Kp = _round_up(B, 8), _round_up(N, 128), _round_up(K, 128)
    tm = _pick_tile(Mp, 8, tm_max)
    tn = _pick_tile(Np, 128, tn_max)
    tk = _pick_tile(Kp, 128, tk_max)

    # v7x shards the "parallel" grid axes over its 2 TensorCores: if the whole
    # problem is a single (tm, tn) tile, split N so both cores get work.
    # (Splitting M would re-stream the dominant weight traffic; N only
    # re-streams the much smaller x.)
    if (Mp // tm) * (Np // tn) < 2 and Np // 128 >= 2:
        tn = _pick_tile(Np, 128, max(128, tn // 2))

    # Pad only what actually needs padding (zero pad: padded eps rows/cols are
    # 0 so the sampled W is exactly 0 there; padded x columns are 0).
    def pad2(a, r, c):
        if a.shape == (r, c):
            return a
        return jnp.pad(a, ((0, r - a.shape[0]), (0, c - a.shape[1])))

    xp = pad2(x, Mp, Kp)
    mu_wp = pad2(mu_w, Np, Kp)
    rho_wp = pad2(rho_w, Np, Kp)
    eps_wp = pad2(eps_w, Np, Kp)
    bias_p = pad2(bias, 1, Np)

    grid = (Mp // tm, Np // tn, Kp // tk)

    x_spec = pl.BlockSpec((tm, tk), lambda i, j, k: (i, k))
    w_spec = pl.BlockSpec((tn, tk), lambda i, j, k: (j, k))
    b_spec = pl.BlockSpec((1, tn), lambda i, j, k: (0, j))
    o_spec = pl.BlockSpec((tm, tn), lambda i, j, k: (i, j))

    out = pl.pallas_call(
        partial(_vilinear_kernel, matmul_dtype=matmul_dtype),
        out_shape=jax.ShapeDtypeStruct((Mp, Np), x.dtype),
        grid_spec=pltpu.PrefetchScalarGridSpec(
            num_scalar_prefetch=0,
            grid=grid,
            in_specs=[x_spec, w_spec, w_spec, w_spec, b_spec],
            out_specs=o_spec,
            scratch_shapes=[pltpu.VMEM((tm, tn), jnp.float32)],
        ),
        compiler_params=pltpu.CompilerParams(
            dimension_semantics=("parallel", "parallel", "arbitrary"),
            # ~20 MiB max footprint at (512, 512, 1024) tiles, double-buffered.
            # 32 MiB raises v5e's 16 MiB scoped default and stays inside the
            # v7x 32 MiB scoped / 64 MiB physical budget.
            vmem_limit_bytes=32 * 1024 * 1024,
        ),
    )(xp, mu_wp, rho_wp, eps_wp, bias_p)

    if (Mp, Np) != (B, N):
        out = out[:B, :N]
    return out


def vilinear_reference(x, mu_w, rho_w, eps_w, mu_b, rho_b, eps_b):
    w = mu_w + jax.nn.softplus(rho_w) * eps_w
    b = mu_b + jax.nn.softplus(rho_b) * eps_b
    return jnp.dot(x, w.T, precision=lax.Precision.HIGHEST) + b


if __name__ == "__main__":
    in_features, out_features, batch = 32, 16, 8

    key = jax.random.PRNGKey(0)
    k_x, k_muw, k_mub, k_ew, k_eb = jax.random.split(key, 5)

    # Deterministic variational-posterior parameter init (VI_init analogue):
    #   mu ~ U(-1/sqrt(fan_in), 1/sqrt(fan_in)),  rho = -5  (sigma ~ 6.7e-3)
    bound = 1.0 / jnp.sqrt(jnp.float32(in_features))
    mu_w = jax.random.uniform(k_muw, (out_features, in_features),
                              minval=-bound, maxval=bound, dtype=jnp.float32)
    rho_w = jnp.full((out_features, in_features), -5.0, dtype=jnp.float32)
    mu_b = jax.random.uniform(k_mub, (1, out_features),
                              minval=-bound, maxval=bound, dtype=jnp.float32)
    rho_b = jnp.full((1, out_features), -5.0, dtype=jnp.float32)

    # Fixed reparameterization noise (one MC sample shared across the batch,
    # matching no_gradient_variance_reduction_forward with MC_samples = 1).
    eps_w = jax.random.normal(k_ew, (out_features, in_features), dtype=jnp.float32)
    eps_b = jax.random.normal(k_eb, (1, out_features), dtype=jnp.float32)

    x = jax.random.normal(k_x, (batch, in_features), dtype=jnp.float32)

    out = vilinear_forward(x, mu_w, rho_w, eps_w, mu_b, rho_b, eps_b)
    out = jax.block_until_ready(out)

    ref = vilinear_reference(x, mu_w, rho_w, eps_w, mu_b, rho_b, eps_b)
    assert out.shape == (batch, out_features)
    assert jnp.allclose(out, ref, atol=1e-4, rtol=1e-4), "mismatch vs reference"

    print("KERNEL_OK")
</pallas_src>

<mosaic_0001>
module attributes {stable_mosaic.version = 11 : i64} {
  func.func @_vilinear_kernel(%arg0: i32, %arg1: i32, %arg2: i32, %arg3: memref<8x128xf32, #tpu.memory_space<vmem>>, %arg4: memref<128x128xf32, #tpu.memory_space<vmem>>, %arg5: memref<128x128xf32, #tpu.memory_space<vmem>>, %arg6: memref<128x128xf32, #tpu.memory_space<vmem>>, %arg7: memref<1x128xf32, #tpu.memory_space<vmem>>, %arg8: memref<8x128xf32, #tpu.memory_space<vmem>>, %arg9: memref<8x128xf32, #tpu.memory_space<vmem>>) attributes {dimension_semantics = [#tpu.dimension_semantics<parallel>, #tpu.dimension_semantics<parallel>, #tpu.dimension_semantics<arbitrary>], iteration_bounds = array<i64: 1, 1, 1>, scalar_prefetch = 0 : i64, scratch_operands = 1 : i64, tpu.core_type = #tpu.core_type<tc>, window_params = [{transform_indices = @transform_0, window_bounds = array<i64: 8, 128>}, {transform_indices = @transform_1, window_bounds = array<i64: 128, 128>}, {transform_indices = @transform_2, window_bounds = array<i64: 128, 128>}, {transform_indices = @transform_3, window_bounds = array<i64: 128, 128>}, {transform_indices = @transform_4, window_bounds = array<i64: 1, 128>}, {transform_indices = @transform_5, window_bounds = array<i64: 8, 128>}]} {
    %c0_i32 = arith.constant 0 : i32
    %0 = arith.cmpi eq, %arg2, %c0_i32 : i32
    %1 = arith.extui %0 : i1 to i32
    %c0_i32_0 = arith.constant 0 : i32
    %2 = arith.cmpi ne, %1, %c0_i32_0 : i32
    scf.if %2 {
      %cst_17 = arith.constant 0.000000e+00 : f32
      %26 = vector.broadcast %cst_17 : f32 to vector<8x128xf32>
      %c0_18 = arith.constant 0 : index
      %c0_19 = arith.constant 0 : index
      %27 = vector.load %arg9[%c0_18, %c0_19] : memref<8x128xf32, #tpu.memory_space<vmem>>, vector<8x128xf32>
      tpu.vector_store %arg9[%c0_18, %c0_19], %26 {strides = array<i32>} : memref<8x128xf32, #tpu.memory_space<vmem>>, vector<8x128xf32>,
    } else {
    }
    %c0 = arith.constant 0 : index
    %c0_1 = arith.constant 0 : index
    %3 = vector.load %arg5[%c0, %c0_1] : memref<128x128xf32, #tpu.memory_space<vmem>>, vector<128x128xf32>
    %c0_2 = arith.constant 0 : index
    %c0_3 = arith.constant 0 : index
    %4 = vector.load %arg4[%c0_2, %c0_3] : memref<128x128xf32, #tpu.memory_space<vmem>>, vector<128x128xf32>
    %cst = arith.constant 0.000000e+00 : f32
    %5 = vector.broadcast %cst : f32 to vector<128x128xf32>
    %6 = arith.maximumf %3, %5 : vector<128x128xf32>
    %7 = math.absf %3 : vector<128x128xf32>
    %cst_4 = arith.constant 0.000000e+00 : f32
    %8 = vector.broadcast %cst_4 : f32 to vector<128x128xf32>
    %9 = arith.subf %8, %7 : vector<128x128xf32>
    %10 = math.exp %9 : vector<128x128xf32>
    %cst_5 = arith.constant 1.000000e+00 : f32
    %11 = vector.broadcast %cst_5 : f32 to vector<128x128xf32>
    %12 = arith.addf %11, %10 : vector<128x128xf32>
    %13 = math.log %12 : vector<128x128xf32>
    %14 = arith.addf %6, %13 : vector<128x128xf32>
    %c0_6 = arith.constant 0 : index
    %c0_7 = arith.constant 0 : index
    %15 = vector.load %arg6[%c0_6, %c0_7] : memref<128x128xf32, #tpu.memory_space<vmem>>, vector<128x128xf32>
    %16 = arith.mulf %14, %15 : vector<128x128xf32>
    %17 = arith.addf %4, %16 : vector<128x128xf32>
    %c0_8 = arith.constant 0 : index
    %c0_9 = arith.constant 0 : index
    %18 = vector.load %arg3[%c0_8, %c0_9] : memref<8x128xf32, #tpu.memory_space<vmem>>, vector<8x128xf32>
    %c0_10 = arith.constant 0 : index
    %c0_11 = arith.constant 0 : index
    %19 = vector.load %arg9[%c0_10, %c0_11] : memref<8x128xf32, #tpu.memory_space<vmem>>, vector<8x128xf32>
    %cst_12 = arith.constant dense<0.000000e+00> : vector<8x128xf32>
    %20 = tpu.matmul %18, %17, %cst_12 {dimension_numbers = #tpu.dot_dimension_numbers<[1], [1], [0], [0], [0, 0, 1, 0], [], []>} : vector<8x128xf32>, vector<128x128xf32>, vector<8x128xf32> -> vector<8x128xf32>
    %21 = arith.addf %19, %20 : vector<8x128xf32>
    %c0_13 = arith.constant 0 : index
    %c0_14 = arith.constant 0 : index
    %22 = vector.load %arg9[%c0_13, %c0_14] : memref<8x128xf32, #tpu.memory_space<vmem>>, vector<8x128xf32>
    tpu.vector_store %arg9[%c0_13, %c0_14], %21 {strides = array<i32>} : memref<8x128xf32, #tpu.memory_space<vmem>>, vector<8x128xf32>,
    %c0_i32_15 = arith.constant 0 : i32
    %23 = arith.cmpi eq, %arg2, %c0_i32_15 : i32
    %24 = arith.extui %23 : i1 to i32
    %c0_i32_16 = arith.constant 0 : i32
    %25 = arith.cmpi ne, %24, %c0_i32_16 : i32
    scf.if %25 {
      %c0_17 = arith.constant 0 : index
      %c0_18 = arith.constant 0 : index
      %26 = vector.load %arg9[%c0_17, %c0_18] : memref<8x128xf32, #tpu.memory_space<vmem>>, vector<8x128xf32>
      %c0_19 = arith.constant 0 : index
      %c0_20 = arith.constant 0 : index
      %27 = vector.load %arg7[%c0_19, %c0_20] : memref<1x128xf32, #tpu.memory_space<vmem>>, vector<1x128xf32>
      %28 = vector.broadcast %27 : vector<1x128xf32> to vector<8x128xf32>
      %29 = arith.addf %26, %28 : vector<8x128xf32>
      %c0_21 = arith.constant 0 : index
      %c0_22 = arith.constant 0 : index
      %30 = vector.load %arg8[%c0_21, %c0_22] : memref<8x128xf32, #tpu.memory_space<vmem>>, vector<8x128xf32>
      tpu.vector_store %arg8[%c0_21, %c0_22], %29 {strides = array<i32>} : memref<8x128xf32, #tpu.memory_space<vmem>>, vector<8x128xf32>,
    } else {
    }
    return
  }
  func.func @transform_0(%arg0: i32, %arg1: i32, %arg2: i32) -> (i32, i32) {
    %c0_i32 = arith.constant 0 : i32
    return %arg0, %arg2 : i32, i32
  }
  func.func @transform_1(%arg0: i32, %arg1: i32, %arg2: i32) -> (i32, i32) {
    %c0_i32 = arith.constant 0 : i32
    return %arg1, %arg2 : i32, i32
  }
  func.func @transform_2(%arg0: i32, %arg1: i32, %arg2: i32) -> (i32, i32) {
    %c0_i32 = arith.constant 0 : i32
    return %arg1, %arg2 : i32, i32
  }
  func.func @transform_3(%arg0: i32, %arg1: i32, %arg2: i32) -> (i32, i32) {
    %c0_i32 = arith.constant 0 : i32
    return %arg1, %arg2 : i32, i32
  }
  func.func @transform_4(%arg0: i32, %arg1: i32, %arg2: i32) -> (i32, i32) {
    %c0_i32 = arith.constant 0 : i32
    %c0_i32_0 = arith.constant 0 : i32
    return %c0_i32, %arg1 : i32, i32
  }
  func.func @transform_5(%arg0: i32, %arg1: i32, %arg2: i32) -> (i32, i32) {
    %c0_i32 = arith.constant 0 : i32
    return %arg0, %arg1 : i32, i32
  }
}

</mosaic_0001>

<llo_original>
// kernel: tpu_custom_call.1
$region0: #{tpu_custom_call.1}
  #allocation0 [shape = 'u32[]', space=smem, size = 0x4, offset = 0x4, fixed_abs, tag = 'smem constant byte address 0x4 - core index']
  #allocation1 [shape = 'u32[144,128]{1,0:T(1,128)}', space=vmem, size = 0x12000, scoped, tag = 'internal scratch']
  #allocation2 [shape = 'f32[8,128]{1,0:T(8,128)}', space=vmem, size = 0x1000, scoped, tag = 'scratch operand']
  %s0 = inlined_call_operand.hbm [shape: f32[8,128], index: 0, kind: input, shape index: {}]
  %s1 = inlined_call_operand.hbm [shape: f32[128,128], index: 1, kind: input, shape index: {}]
  %s2 = inlined_call_operand.hbm [shape: f32[128,128], index: 2, kind: input, shape index: {}]
  %s3 = inlined_call_operand.hbm [shape: f32[128,128], index: 3, kind: input, shape index: {}]
  %s4 = inlined_call_operand.vmem [shape: f32[1,128], index: 4, kind: input, shape index: {}]
  %s5 = inlined_call_operand.hbm [shape: f32[8,128], index: 5, kind: output, shape index: {}]
  %s6 = sld [smem:[#allocation0]]
  $region54: #{tpu_custom_call.1} parent=0
    _
  %s8 = ssub.s32 1, %s6
  %s9 = scalar_select 0, %s8, %s6
  $region1: #{tpu_custom_call.1} parent=0
    #allocation3 [shape = 'u8[4096]{0}', space=vmem, size = 0x1000, scoped, tag = 'input window, operand 0, single buffered']
    #allocation4 [shape = 's32[1]{0}', space=sflag, size = 0x4, scoped, tag = 'scoped memory for tpu_custom_call.1']
    #allocation5 [shape = 's32[1]{0}', space=sflag, size = 0x4, scoped, tag = 'scoped memory for tpu_custom_call.1']
    #allocation6 [shape = 'u8[65536]{0}', space=vmem, size = 0x10000, scoped, tag = 'input window, operand 1, single buffered']
    #allocation7 [shape = 's32[1]{0}', space=sflag, size = 0x4, scoped, tag = 'scoped memory for tpu_custom_call.1']
    #allocation8 [shape = 'u8[65536]{0}', space=vmem, size = 0x10000, scoped, tag = 'input window, operand 2, single buffered']
    #allocation9 [shape = 'u8[65536]{0}', space=vmem, size = 0x10000, scoped, tag = 'input window, operand 3, single buffered']
    #allocation10 [shape = 's32[1]{0}', space=sflag, size = 0x4, scoped, tag = 'scoped memory for tpu_custom_call.1']
    #allocation11 [shape = 'u8[4096]{0}', space=vmem, size = 0x1000, scoped, tag = 'output window, operand 0, single buffered']
    %10 = vsyncpa [#allocation4], 0
    %11 = vsyncpa [#allocation7], 0
    %12 = vsyncpa [#allocation10], 0
    %13 = vsyncpa [#allocation5], 0
    // Predicated region
    $region2: #{tpu_custom_call.1} parent=1 // pred_check
      _
    $region3: #{tpu_custom_call.1} parent=1 // pred_check_branch
      %15 = sbr.rel (0) target = $region5
    $region4: #{tpu_custom_call.1} parent=1 // pred_region
      %s17 = ssub.s32 128, 128
      %18 = vsyncadd [#allocation4], %s17
      %s20 = sshll.u32 [#allocation3], 4
      %s21 = int_to_ptr.vmem [resolvable:$true] %s20
      %23 = dma.hbm_to_vmem [thread:$0]  %s0, 128, %s21, [#allocation4]
    $region5: #{tpu_custom_call.1} parent=1 // pred_fallthru
      _
    // Predicated region
    $region6: #{tpu_custom_call.1} parent=1 // pred_check
      _
    $region7: #{tpu_custom_call.1} parent=1 // pred_check_branch
      %25 = sbr.rel (0) target = $region9
    $region8: #{tpu_custom_call.1} parent=1 // pred_region
      %s27 = ssub.s32 2048, 2048
      %28 = vsyncadd [#allocation7], %s27
      %s29 = sshll.u32 [#allocation6], 4
      %s30 = int_to_ptr.vmem [resolvable:$true] %s29
      %35 = dma.hbm_to_vmem [thread:$0]  %s1, 2048, %s30, [#allocation7], 128, 128, 8
    $region9: #{tpu_custom_call.1} parent=1 // pred_fallthru
      _
    // Predicated region
    $region10: #{tpu_custom_call.1} parent=1 // pred_check
      _
    $region11: #{tpu_custom_call.1} parent=1 // pred_check_branch
      %37 = sbr.rel (0) target = $region13
    $region12: #{tpu_custom_call.1} parent=1 // pred_region
      %s39 = ssub.s32 2048, 2048
      %40 = vsyncadd [#allocation7], %s39
      %s41 = sshll.u32 [#allocation8], 4
      %s42 = int_to_ptr.vmem [resolvable:$true] %s41
      %47 = dma.hbm_to_vmem [thread:$0]  %s2, 2048, %s42, [#allocation7], 128, 128, 8
    $region13: #{tpu_custom_call.1} parent=1 // pred_fallthru
      _
    // Predicated region
    $region14: #{tpu_custom_call.1} parent=1 // pred_check
      _
    $region15: #{tpu_custom_call.1} parent=1 // pred_check_branch
      %49 = sbr.rel (0) target = $region17
    $region16: #{tpu_custom_call.1} parent=1 // pred_region
      %s51 = ssub.s32 2048, 2048
      %52 = vsyncadd [#allocation10], %s51
      %s53 = sshll.u32 [#allocation9], 4
      %s54 = int_to_ptr.vmem [resolvable:$true] %s53
      %59 = dma.hbm_to_vmem [thread:$0]  %s3, 2048, %s54, [#allocation10], 128, 128, 8
    $region17: #{tpu_custom_call.1} parent=1 // pred_fallthru
      _
    // Predicated region
    $region18: #{tpu_custom_call.1} parent=1 // pred_check
      _
    $region19: #{tpu_custom_call.1} parent=1 // pred_check_branch
      %61 = sbr.rel (0) target = $region21
    $region20: #{tpu_custom_call.1} parent=1 // pred_region
      _
    $region21: #{tpu_custom_call.1} parent=1 // pred_fallthru
      _
    // Predicated region
    $region22: #{tpu_custom_call.1} parent=1 // pred_check
      _
    $region23: #{tpu_custom_call.1} parent=1 // pred_check_branch
      %63 = sbr.rel (0) target = $region25
    $region24: #{tpu_custom_call.1} parent=1 // pred_region
      %64 = dma.done [#allocation4], 128
    $region25: #{tpu_custom_call.1} parent=1 // pred_fallthru
      _
    // Predicated region
    $region26: #{tpu_custom_call.1} parent=1 // pred_check
      _
    $region27: #{tpu_custom_call.1} parent=1 // pred_check_branch
      %66 = sbr.rel (0) target = $region29
    $region28: #{tpu_custom_call.1} parent=1 // pred_region
      %67 = dma.done [#allocation7], 2048
    $region29: #{tpu_custom_call.1} parent=1 // pred_fallthru
      _
    // Predicated region
    $region30: #{tpu_custom_call.1} parent=1 // pred_check
      _
    $region31: #{tpu_custom_call.1} parent=1 // pred_check_branch
      %69 = sbr.rel (0) target = $region33
    $region32: #{tpu_custom_call.1} parent=1 // pred_region
      %70 = dma.done [#allocation7], 2048
    $region33: #{tpu_custom_call.1} parent=1 // pred_fallthru
      _
    // Predicated region
    $region34: #{tpu_custom_call.1} parent=1 // pred_check
      _
    $region35: #{tpu_custom_call.1} parent=1 // pred_check_branch
      %72 = sbr.rel (0) target = $region37
    $region36: #{tpu_custom_call.1} parent=1 // pred_region
      %73 = dma.done [#allocation10], 2048
    $region37: #{tpu_custom_call.1} parent=1 // pred_fallthru
      _
    %p74 = scmp.eq.s32.totalorder 0, 0
    // Predicated region
    $region38: #{tpu_custom_call.1} parent=1 // pred_check
      %p75 = pneg %p74
    $region39: #{tpu_custom_call.1} parent=1 // pred_check_branch
      %77 = sbr.rel (%p75) target = $region41
    $region40: #{tpu_custom_call.1} parent=1 // pred_region
      %78 = vst [vmem:[#allocation2] sm:$0xff] 0.0
    $region41: #{tpu_custom_call.1} parent=1 // pred_fallthru
      _
    %v79 = vld [vmem:[#allocation8] sm:$0xff]
    %v80 = vld [vmem:[#allocation8 + $0x8] sm:$0xff]
    %v81 = vld [vmem:[#allocation8 + $0x10] sm:$0xff]
    %v82 = vld [vmem:[#allocation8 + $0x18] sm:$0xff]
    %v83 = vld [vmem:[#allocation8 + $0x20] sm:$0xff]
    %v84 = vld [vmem:[#allocation8 + $0x28] sm:$0xff]
    %v85 = vld [vmem:[#allocation8 + $0x30] sm:$0xff]
    %v86 = vld [vmem:[#allocation8 + $0x38] sm:$0xff]
    %v87 = vld [vmem:[#allocation8 + $0x40] sm:$0xff]
    %v88 = vld [vmem:[#allocation8 + $0x48] sm:$0xff]
    %v89 = vld [vmem:[#allocation8 + $0x50] sm:$0xff]
    %v90 = vld [vmem:[#allocation8 + $0x58] sm:$0xff]
    %v91 = vld [vmem:[#allocation8 + $0x60] sm:$0xff]
    %v92 = vld [vmem:[#allocation8 + $0x68] sm:$0xff]
    %v93 = vld [vmem:[#allocation8 + $0x70] sm:$0xff]
    %v94 = vld [vmem:[#allocation8 + $0x78] sm:$0xff]
    %v95 = vld [vmem:[#allocation6] sm:$0xff]
    %v96 = vld [vmem:[#allocation6 + $0x8] sm:$0xff]
    %v97 = vld [vmem:[#allocation6 + $0x10] sm:$0xff]
    %v98 = vld [vmem:[#allocation6 + $0x18] sm:$0xff]
    %v99 = vld [vmem:[#allocation6 + $0x20] sm:$0xff]
    %v100 = vld [vmem:[#allocation6 + $0x28] sm:$0xff]
    %v101 = vld [vmem:[#allocation6 + $0x30] sm:$0xff]
    %v102 = vld [vmem:[#allocation6 + $0x38] sm:$0xff]
    %v103 = vld [vmem:[#allocation6 + $0x40] sm:$0xff]
    %v104 = vld [vmem:[#allocation6 + $0x48] sm:$0xff]
    %v105 = vld [vmem:[#allocation6 + $0x50] sm:$0xff]
    %v106 = vld [vmem:[#allocation6 + $0x58] sm:$0xff]
    %v107 = vld [vmem:[#allocation6 + $0x60] sm:$0xff]
    %v108 = vld [vmem:[#allocation6 + $0x68] sm:$0xff]
    %v109 = vld [vmem:[#allocation6 + $0x70] sm:$0xff]
    %v110 = vld [vmem:[#allocation6 + $0x78] sm:$0xff]
    %v111 = vmax.f32 %v79, 0.0
    %v112 = vmax.f32 %v80, 0.0
    %v113 = vmax.f32 %v81, 0.0
    %v114 = vmax.f32 %v82, 0.0
    %v115 = vmax.f32 %v83, 0.0
    %v116 = vmax.f32 %v84, 0.0
    %v117 = vmax.f32 %v85, 0.0
    %v118 = vmax.f32 %v86, 0.0
    %v119 = vmax.f32 %v87, 0.0
    %v120 = vmax.f32 %v88, 0.0
    %v121 = vmax.f32 %v89, 0.0
    %v122 = vmax.f32 %v90, 0.0
    %v123 = vmax.f32 %v91, 0.0
    %v124 = vmax.f32 %v92, 0.0
    %v125 = vmax.f32 %v93, 0.0
    %v126 = vmax.f32 %v94, 0.0
    %v127 = vand.u32 2147483647, %v79
    %v128 = vand.u32 2147483647, %v80
    %v129 = vand.u32 2147483647, %v81
    %v130 = vand.u32 2147483647, %v82
    %v131 = vand.u32 2147483647, %v83
    %v132 = vand.u32 2147483647, %v84
    %v133 = vand.u32 2147483647, %v85
    %v134 = vand.u32 2147483647, %v86
    %v135 = vand.u32 2147483647, %v87
    %v136 = vand.u32 2147483647, %v88
    %v137 = vand.u32 2147483647, %v89
    %v138 = vand.u32 2147483647, %v90
    %v139 = vand.u32 2147483647, %v91
    %v140 = vand.u32 2147483647, %v92
    %v141 = vand.u32 2147483647, %v93
    %v142 = vand.u32 2147483647, %v94
    %v143 = vsub.f32 0.0, %v127
    %v144 = vsub.f32 0.0, %v128
    %v145 = vsub.f32 0.0, %v129
    %v146 = vsub.f32 0.0, %v130
    %v147 = vsub.f32 0.0, %v131
    %v148 = vsub.f32 0.0, %v132
    %v149 = vsub.f32 0.0, %v133
    %v150 = vsub.f32 0.0, %v134
    %v151 = vsub.f32 0.0, %v135
    %v152 = vsub.f32 0.0, %v136
    %v153 = vsub.f32 0.0, %v137
    %v154 = vsub.f32 0.0, %v138
    %v155 = vsub.f32 0.0, %v139
    %v156 = vsub.f32 0.0, %v140
    %v157 = vsub.f32 0.0, %v141
    %v158 = vsub.f32 0.0, %v142
    %v159 = vmul.f32 %v143, 1.442695
    %v160 = vpow.pop %v159
    %v161 = vmul.f32 %v144, 1.442695
    %v162 = vpow.pop %v161
    %v163 = vmul.f32 %v145, 1.442695
    %v164 = vpow.pop %v163
    %v165 = vmul.f32 %v146, 1.442695
    %v166 = vpow.pop %v165
    %v167 = vmul.f32 %v147, 1.442695
    %v168 = vpow.pop %v167
    %v169 = vmul.f32 %v148, 1.442695
    %v170 = vpow.pop %v169
    %v171 = vmul.f32 %v149, 1.442695
    %v172 = vpow.pop %v171
    %v173 = vmul.f32 %v150, 1.442695
    %v174 = vpow.pop %v173
    %v175 = vmul.f32 %v151, 1.442695
    %v176 = vpow.pop %v175
    %v177 = vmul.f32 %v152, 1.442695
    %v178 = vpow.pop %v177
    %v179 = vmul.f32 %v153, 1.442695
    %v180 = vpow.pop %v179
    %v181 = vmul.f32 %v154, 1.442695
    %v182 = vpow.pop %v181
    %v183 = vmul.f32 %v155, 1.442695
    %v184 = vpow.pop %v183
    %v185 = vmul.f32 %v156, 1.442695
    %v186 = vpow.pop %v185
    %v187 = vmul.f32 %v157, 1.442695
    %v188 = vpow.pop %v187
    %v189 = vmul.f32 %v158, 1.442695
    %v190 = vpow.pop %v189
    %v191 = vadd.f32 %v160, 1.0
    %v192 = vadd.f32 %v162, 1.0
    %v193 = vadd.f32 %v164, 1.0
    %v194 = vadd.f32 %v166, 1.0
    %v195 = vadd.f32 %v168, 1.0
    %v196 = vadd.f32 %v170, 1.0
    %v197 = vadd.f32 %v172, 1.0
    %v198 = vadd.f32 %v174, 1.0
    %v199 = vadd.f32 %v176, 1.0
    %v200 = vadd.f32 %v178, 1.0
    %v201 = vadd.f32 %v180, 1.0
    %v202 = vadd.f32 %v182, 1.0
    %v203 = vadd.f32 %v184, 1.0
    %v204 = vadd.f32 %v186, 1.0
    %v205 = vadd.f32 %v188, 1.0
    %v206 = vadd.f32 %v190, 1.0
    %v207 = vlog2.pop %v191
    %v208 = vmul.f32 %v207, 0.6931472
    %v209 = vlog2.pop %v192
    %v210 = vmul.f32 %v209, 0.6931472
    %v211 = vlog2.pop %v193
    %v212 = vmul.f32 %v211, 0.6931472
    %v213 = vlog2.pop %v194
    %v214 = vmul.f32 %v213, 0.6931472
    %v215 = vlog2.pop %v195
    %v216 = vmul.f32 %v215, 0.6931472
    %v217 = vlog2.pop %v196
    %v218 = vmul.f32 %v217, 0.6931472
    %v219 = vlog2.pop %v197
    %v220 = vmul.f32 %v219, 0.6931472
    %v221 = vlog2.pop %v198
    %v222 = vmul.f32 %v221, 0.6931472
    %v223 = vlog2.pop %v199
    %v224 = vmul.f32 %v223, 0.6931472
    %v225 = vlog2.pop %v200
    %v226 = vmul.f32 %v225, 0.6931472
    %v227 = vlog2.pop %v201
    %v228 = vmul.f32 %v227, 0.6931472
    %v229 = vlog2.pop %v202
    %v230 = vmul.f32 %v229, 0.6931472
    %v231 = vlog2.pop %v203
    %v232 = vmul.f32 %v231, 0.6931472
    %v233 = vlog2.pop %v204
    %v234 = vmul.f32 %v233, 0.6931472
    %v235 = vlog2.pop %v205
    %v236 = vmul.f32 %v235, 0.6931472
    %v237 = vlog2.pop %v206
    %v238 = vmul.f32 %v237, 0.6931472
    %v239 = vadd.f32 %v111, %v208
    %v240 = vadd.f32 %v112, %v210
    %v241 = vadd.f32 %v113, %v212
    %v242 = vadd.f32 %v114, %v214
    %v243 = vadd.f32 %v115, %v216
    %v244 = vadd.f32 %v116, %v218
    %v245 = vadd.f32 %v117, %v220
    %v246 = vadd.f32 %v118, %v222
    %v247 = vadd.f32 %v119, %v224
    %v248 = vadd.f32 %v120, %v226
    %v249 = vadd.f32 %v121, %v228
    %v250 = vadd.f32 %v122, %v230
    %v251 = vadd.f32 %v123, %v232
    %v252 = vadd.f32 %v124, %v234
    %v253 = vadd.f32 %v125, %v236
    %v254 = vadd.f32 %v126, %v238
    %v255 = vld [vmem:[#allocation9] sm:$0xff]
    %v256 = vld [vmem:[#allocation9 + $0x8] sm:$0xff]
    %v257 = vld [vmem:[#allocation9 + $0x10] sm:$0xff]
    %v258 = vld [vmem:[#allocation9 + $0x18] sm:$0xff]
    %v259 = vld [vmem:[#allocation9 + $0x20] sm:$0xff]
    %v260 = vld [vmem:[#allocation9 + $0x28] sm:$0xff]
    %v261 = vld [vmem:[#allocation9 + $0x30] sm:$0xff]
    %v262 = vld [vmem:[#allocation9 + $0x38] sm:$0xff]
    %v263 = vld [vmem:[#allocation9 + $0x40] sm:$0xff]
    %v264 = vld [vmem:[#allocation9 + $0x48] sm:$0xff]
    %v265 = vld [vmem:[#allocation9 + $0x50] sm:$0xff]
    %v266 = vld [vmem:[#allocation9 + $0x58] sm:$0xff]
    %v267 = vld [vmem:[#allocation9 + $0x60] sm:$0xff]
    %v268 = vld [vmem:[#allocation9 + $0x68] sm:$0xff]
    %v269 = vld [vmem:[#allocation9 + $0x70] sm:$0xff]
    %v270 = vld [vmem:[#allocation9 + $0x78] sm:$0xff]
    %v271 = vmul.f32 %v239, %v255
    %v272 = vmul.f32 %v240, %v256
    %v273 = vmul.f32 %v241, %v257
    %v274 = vmul.f32 %v242, %v258
    %v275 = vmul.f32 %v243, %v259
    %v276 = vmul.f32 %v244, %v260
    %v277 = vmul.f32 %v245, %v261
    %v278 = vmul.f32 %v246, %v262
    %v279 = vmul.f32 %v247, %v263
    %v280 = vmul.f32 %v248, %v264
    %v281 = vmul.f32 %v249, %v265
    %v282 = vmul.f32 %v250, %v266
    %v283 = vmul.f32 %v251, %v267
    %v284 = vmul.f32 %v252, %v268
    %v285 = vmul.f32 %v253, %v269
    %v286 = vmul.f32 %v254, %v270
    %v287 = vadd.f32 %v95, %v271
    %v288 = vadd.f32 %v96, %v272
    %v289 = vadd.f32 %v97, %v273
    %v290 = vadd.f32 %v98, %v274
    %v291 = vadd.f32 %v99, %v275
    %v292 = vadd.f32 %v100, %v276
    %v293 = vadd.f32 %v101, %v277
    %v294 = vadd.f32 %v102, %v278
    %v295 = vadd.f32 %v103, %v279
    %v296 = vadd.f32 %v104, %v280
    %v297 = vadd.f32 %v105, %v281
    %v298 = vadd.f32 %v106, %v282
    %v299 = vadd.f32 %v107, %v283
    %v300 = vadd.f32 %v108, %v284
    %v301 = vadd.f32 %v109, %v285
    %v302 = vadd.f32 %v110, %v286
    %v303 = vld [vmem:[#allocation3] sm:$0xff]
    %v304 = vld [vmem:[#allocation2] sm:$0xff]
    %305 = vmatprep.subr.mxu0 0.0
    %306 = vmatpush1.xpose.msra.mxu0 %v287
    %307 = vmatprep.subr.mxu0 0.0
    %308 = vmatpush1.xpose.msra.mxu0 %v288
    %309 = vmatprep.subr.mxu0 0.0
    %310 = vmatpush1.xpose.msra.mxu0 %v289
    %311 = vmatprep.subr.mxu0 0.0
    %312 = vmatpush1.xpose.msra.mxu0 %v290
    %313 = vmatprep.subr.mxu0 0.0
    %314 = vmatpush1.xpose.msra.mxu0 %v291
    %315 = vmatprep.subr.mxu0 0.0
    %316 = vmatpush1.xpose.msra.mxu0 %v292
    %317 = vmatprep.subr.mxu0 0.0
    %318 = vmatpush1.xpose.msra.mxu0 %v293
    %319 = vmatprep.subr.mxu0 0.0
    %320 = vmatpush1.xpose.msra.mxu0 %v294
    %321 = vmatprep.subr.mxu0 0.0
    %322 = vmatpush1.xpose.msra.mxu0 %v295
    %323 = vmatprep.subr.mxu0 0.0
    %324 = vmatpush1.xpose.msra.mxu0 %v296
    %325 = vmatprep.subr.mxu0 0.0
    %326 = vmatpush1.xpose.msra.mxu0 %v297
    %327 = vmatprep.subr.mxu0 0.0
    %328 = vmatpush1.xpose.msra.mxu0 %v298
    %329 = vmatprep.subr.mxu0 0.0
    %330 = vmatpush1.xpose.msra.mxu0 %v299
    %331 = vmatprep.subr.mxu0 0.0
    %332 = vmatpush1.xpose.msra.mxu0 %v300
    %333 = vmatprep.subr.mxu0 0.0
    %334 = vmatpush1.xpose.msra.mxu0 %v301
    %335 = vmatprep.subr.mxu0 0.0
    %336 = vmatpush1.xpose.msra.mxu0 %v302
    %337 = vmatprep.subr.mxu0 0.0
    %338 = vmatpush1.xpose.msra.mxu0 0.0
    %339 = vmatprep.subr.mxu0 0.0
    %340 = vmatpush1.xpose.msra.mxu0 0.0
    %341 = vmatprep.subr.mxu0 0.0
    %342 = vmatpush1.xpose.msra.mxu0 0.0
    %343 = vmatprep.subr.mxu0 0.0
    %344 = vmatpush1.xpose.msra.mxu0 0.0
    %345 = vmatprep.subr.mxu0 0.0
    %346 = vmatpush1.xpose.msra.mxu0 0.0
    %347 = vmatprep.subr.mxu0 0.0
    %348 = vmatpush1.xpose.msra.mxu0 0.0
    %349 = vmatprep.subr.mxu0 0.0
    %350 = vmatpush1.xpose.msra.mxu0 0.0
    %351 = vmatprep.subr.mxu0 0.0
    %352 = vmatpush1.xpose.msra.mxu0 0.0
    %353 = vmatprep.subr.mxu0 0.0
    %354 = vmatpush1.xpose.msra.mxu0 0.0
    %355 = vmatprep.subr.mxu0 0.0
    %356 = vmatpush1.xpose.msra.mxu0 0.0
    %357 = vmatprep.subr.mxu0 0.0
    %358 = vmatpush1.xpose.msra.mxu0 0.0
    %359 = vmatprep.subr.mxu0 0.0
    %360 = vmatpush1.xpose.msra.mxu0 0.0
    %361 = vmatprep.subr.mxu0 0.0
    %362 = vmatpush1.xpose.msra.mxu0 0.0
    %363 = vmatprep.subr.mxu0 0.0
    %364 = vmatpush1.xpose.msra.mxu0 0.0
    %365 = vmatprep.subr.mxu0 0.0
    %366 = vmatpush1.xpose.msra.mxu0 0.0
    %367 = vmatprep.subr.mxu0 0.0
    %368 = vmatpush1.xpose.msra.mxu0 0.0
    %369 = vmatprep.mubr.f32.mxu0 0.0
    %370 = vmatmul.mubr.f32.gmra.mrb[0].mxu0 %v303
    %v371 = vpop.f32.mrb[0].mxu0
    %v372 = vadd.f32 0.0, %v371
    %v373 = vpop.f32.mrb[0].mxu0
    %374 = vdwg.mxu0
    %v375 = vadd.f32 %v304, %v372
    %376 = vst [vmem:[#allocation2] sm:$0xff] %v375
    // Predicated region
    $region42: #{tpu_custom_call.1} parent=1 // pred_check
      %p377 = pneg %p74
    $region43: #{tpu_custom_call.1} parent=1 // pred_check_branch
      %379 = sbr.rel (%p377) target = $region45
    $region44: #{tpu_custom_call.1} parent=1 // pred_region
      %v380 = vld [vmem:[#allocation2] sm:$0xff]
      %v381 = vld [vmem:[%s4] sm:$0x1]
      %v383 = vlaneseq
      %v384 = vshrl.u32 %v383, 7
      %v385 = vsub.s32 0, %v384
      %v386 = vrot.slane %v381, %v385
      %v388 = vadd.f32 %v380, %v386
      %389 = vst [vmem:[#allocation11] sm:$0xff] %v388
    $region45: #{tpu_custom_call.1} parent=1 // pred_fallthru
      _
    // Predicated region
    $region46: #{tpu_custom_call.1} parent=1 // pred_check
      _
    $region47: #{tpu_custom_call.1} parent=1 // pred_check_branch
      %391 = sbr.rel (0) target = $region49
    $region48: #{tpu_custom_call.1} parent=1 // pred_region
      %s393 = ssub.s32 128, 128
      %394 = vsyncadd [#allocation5], %s393
      %s396 = sshll.u32 [#allocation11], 4
      %s397 = int_to_ptr.vmem [resolvable:$true] %s396
      %399 = dma.vmem_to_hbm [thread:$0]  %s397, 128, %s5, [#allocation5]
    $region49: #{tpu_custom_call.1} parent=1 // pred_fallthru
      _
    // Predicated region
    $region50: #{tpu_custom_call.1} parent=1 // pred_check
      _
    $region51: #{tpu_custom_call.1} parent=1 // pred_check_branch
      %401 = sbr.rel (0) target = $region53
    $region52: #{tpu_custom_call.1} parent=1 // pred_region
      %402 = dma.done [#allocation5], 128
    $region53: #{tpu_custom_call.1} parent=1 // pred_fallthru
      _
    %403 = vsyncpa [#allocation4], 1
    %404 = vsyncpa [#allocation7], 1
    %405 = vsyncpa [#allocation10], 1
    %406 = vsyncpa [#allocation5], 1

</llo_original>
